<compile_context>
chip_gen: v7x
topology: tpu7x:2x2x1
jax: 0.10.0
libtpu: 0.0.40
codegen_flags: <defaults>
</compile_context>

<pallas_src>
import functools

import jax
import jax.numpy as jnp
from jax.experimental import pallas as pl
from jax.experimental.pallas import tpu as pltpu


def _round_up(x, m):
    return ((x + m - 1) // m) * m


def _mlp_kernel(x_ref, w1, b1, w2, b2, w3, b3, w4, b4, w5, b5, o_ref,
                *, out_size):
    compute_dtype = w1.dtype  # bf16 MXU inputs; f32 accumulation.

    def dense_relu(h, w_ref, b_ref):
        z = jnp.dot(h, w_ref[...], preferred_element_type=jnp.float32) + b_ref[...]
        return jnp.maximum(z, 0.0).astype(compute_dtype)

    # x arrives as raw f32 rows; cast to bf16 in-VMEM (hidden under DMA/MXU).
    h = x_ref[...].astype(compute_dtype)   # (tile_b, D)
    h = dense_relu(h, w1, b1)              # (tile_b, 256)
    h = dense_relu(h, w2, b2)              # (tile_b, 128)
    h = dense_relu(h, w3, b3)              # (tile_b, 128)
    h = dense_relu(h, w4, b4)              # (tile_b, 128)  cols >= 32 are zero

    # Final projection into a lane-dense (tile_b, 128) slab (f32 accumulate).
    y = jnp.dot(h, w5[...], preferred_element_type=jnp.float32) + b5[...]

    if out_size <= 2:
        # softplus + Threshold(1e-9, 1e-9); padded lanes are sliced off outside.
        y = jnp.logaddexp(0.0, y)
        y = jnp.where(y > 1e-9, y, 1e-9)
    else:
        # softmax over the (padded) feature dim: mask padded lanes to -inf so
        # they contribute nothing to the normalization.
        col = jax.lax.broadcasted_iota(jnp.int32, y.shape, dimension=1)
        y = jnp.where(col < out_size, y, -jnp.inf)
        m = jnp.max(y, axis=-1, keepdims=True)
        e = jnp.exp(y - m)
        y = e * pl.reciprocal(jnp.sum(e, axis=-1, keepdims=True), approx=True)

    o_ref[...] = y.astype(o_ref.dtype)


def prepare_params(params, compute_dtype=jnp.bfloat16):
    """One-time (hoisted) padding + casting of the weights.

    Layers 4/5 are padded to 128-wide K/N so every in-kernel matmul is
    128-aligned; biases stay f32. Zero padding is exact (relu(0+0)=0)."""
    (w1, b1), (w2, b2), (w3, b3), (w4, b4), (w5, b5) = params
    D = w1.shape[0]
    H4, N5 = 128, 128

    def pad_w(w, rows, cols):
        return jnp.pad(w, ((0, rows - w.shape[0]),
                           (0, cols - w.shape[1]))).astype(compute_dtype)

    def pad_b(b, cols):
        return jnp.pad(b, ((0, 0), (0, cols - b.shape[1]))).astype(jnp.float32)

    return (
        pad_w(w1, D, 256), pad_b(b1, 256),
        pad_w(w2, 256, 128), pad_b(b2, 128),
        pad_w(w3, 128, 128), pad_b(b3, 128),
        pad_w(w4, 128, H4),  pad_b(b4, H4),
        pad_w(w5, H4, N5),   pad_b(b5, N5),
    )


def linear_forward(x, padded_weights, *, out_size=1, target_tile=1024):
    """x: (B, win_length, n_features) float32. Returns (B, out_size) float32."""
    B = x.shape[0]
    D = x.shape[1] * x.shape[2]
    x_flat = x.reshape(B, D)            # glue: unsqueeze + Flatten (no pad/cast)
    N5 = 128                            # lane-dense output slab width

    # Padding-aware batch tiling: split B as evenly as possible into tiles that
    # are multiples of 8. Force >=2 tiles when B > 8 so both v7x cores work.
    n_tiles = max(1, pl.cdiv(B, target_tile))
    if n_tiles == 1 and B > 8:
        n_tiles = 2
    tile_b = _round_up(pl.cdiv(B, n_tiles), 8)

    # VMEM budget (double-buffered x/out + f32 intermediates + weights); cap
    # tile_b so the same kernel stays well inside v7x's 64 MiB VMEM.
    w_bytes = sum(int(a.size) * a.dtype.itemsize for a in padded_weights)

    def tile_vmem(tb):
        return (2 * tb * D * 4                              # x f32, dbl-buffered
                + 2 * tb * N5 * 2                           # out bf16, dbl-buffered
                + tb * (256 + 128 + 128 + 128 + 128) * 4    # f32 intermediates
                + w_bytes)

    budget = 16 * 1024 * 1024
    while tile_b > 8 and tile_vmem(tile_b) > budget:
        tile_b = max(8, _round_up(tile_b // 2, 8))

    grid = (pl.cdiv(B, tile_b),)  # last tile may be ragged: OOB rows discarded

    # Weights/biases are small -> full-array blocks, constant index_map
    # (kept resident across the batch grid).
    def full_spec(a):
        return pl.BlockSpec(a.shape, lambda i: (0, 0))

    kernel = functools.partial(_mlp_kernel, out_size=out_size)

    flops = 2 * B * (D * 256 + 256 * 128 + 128 * 128 + 128 * 128 + 128 * 128)
    transcendentals = B * N5
    bytes_accessed = B * D * 4 + w_bytes + B * N5 * 2

    out_slab = pl.pallas_call(
        kernel,
        out_shape=jax.ShapeDtypeStruct((B, N5), jnp.bfloat16),
        grid_spec=pltpu.PrefetchScalarGridSpec(
            num_scalar_prefetch=0,
            grid=grid,
            in_specs=[pl.BlockSpec((tile_b, D), lambda i: (i, 0))]
                     + [full_spec(a) for a in padded_weights],
            out_specs=pl.BlockSpec((tile_b, N5), lambda i: (i, 0)),
        ),
        compiler_params=pltpu.CompilerParams(
            dimension_semantics=("parallel",),
            vmem_limit_bytes=32 * 1024 * 1024),
        cost_estimate=pl.CostEstimate(flops=int(flops),
                                      transcendentals=int(transcendentals),
                                      bytes_accessed=int(bytes_accessed)),
    )(x_flat, *padded_weights)

    return out_slab[:, :out_size].astype(jnp.float32)


def init_params(key, in_dim, out_size=1):
    """Deterministic synthetic params. Weight layout: (in, out); bias: (1, out)."""
    dims = [in_dim, 256, 128, 128, 32, out_size]
    params = []
    for i in range(5):
        key, kw, kb = jax.random.split(key, 3)
        scale = 1.0 / jnp.sqrt(dims[i])
        w = jax.random.uniform(kw, (dims[i], dims[i + 1]),
                               minval=-scale, maxval=scale, dtype=jnp.float32)
        b = jax.random.uniform(kb, (1, dims[i + 1]),
                               minval=-scale, maxval=scale, dtype=jnp.float32)
        params.append((w, b))
    return params


def _reference(x, params, out_size):
    h = x.reshape(x.shape[0], -1)
    *hidden, (w5, b5) = params
    for w, b in hidden:
        h = jnp.maximum(h @ w + b, 0.0)
    y = h @ w5 + b5
    if out_size <= 2:
        y = jnp.logaddexp(0.0, y)
        return jnp.where(y > 1e-9, y, 1e-9)
    return jax.nn.softmax(y, axis=1)


if __name__ == "__main__":
    key = jax.random.PRNGKey(0)

    # Case 1: small, out_size=1 (softplus + threshold head).
    B, WIN, FEAT, OUT = 8, 16, 8, 1
    key, kx, kp = jax.random.split(key, 3)
    x = jax.random.normal(kx, (B, WIN, FEAT), dtype=jnp.float32)
    params = init_params(kp, WIN * FEAT, out_size=OUT)
    padded = prepare_params(params)                    # hoisted one-time prep
    y = jax.block_until_ready(linear_forward(x, padded, out_size=OUT))
    ref = _reference(x, params, OUT)
    assert y.shape == (B, OUT)
    assert jnp.allclose(y, ref, atol=3e-2, rtol=3e-2)  # bf16 MXU + bf16 output

    # Case 2: non-multiple batch, out_size=5 (softmax head); exercises the
    # 2-tile padding-aware grid with a ragged last tile.
    B2, OUT2 = 1029, 5
    key, kx2, kp2 = jax.random.split(key, 3)
    x2 = jax.random.normal(kx2, (B2, WIN, FEAT), dtype=jnp.float32)
    params2 = init_params(kp2, WIN * FEAT, out_size=OUT2)
    padded2 = prepare_params(params2)
    y2 = jax.block_until_ready(linear_forward(x2, padded2, out_size=OUT2))
    ref2 = _reference(x2, params2, OUT2)
    assert y2.shape == (B2, OUT2)
    assert jnp.allclose(jnp.sum(y2, axis=1), 1.0, atol=5e-3)  # bf16 out + vrcp
    assert jnp.allclose(y2, ref2, atol=3e-2, rtol=3e-2)

    print("KERNEL_OK")
</pallas_src>

<mosaic_0001>
module attributes {stable_mosaic.version = 11 : i64} {
  func.func @_mlp_kernel(%arg0: i32, %arg1: memref<8x128xf32, #tpu.memory_space<vmem>>, %arg2: memref<128x256xbf16, #tpu.memory_space<vmem>>, %arg3: memref<1x256xf32, #tpu.memory_space<vmem>>, %arg4: memref<256x128xbf16, #tpu.memory_space<vmem>>, %arg5: memref<1x128xf32, #tpu.memory_space<vmem>>, %arg6: memref<128x128xbf16, #tpu.memory_space<vmem>>, %arg7: memref<1x128xf32, #tpu.memory_space<vmem>>, %arg8: memref<128x128xbf16, #tpu.memory_space<vmem>>, %arg9: memref<1x128xf32, #tpu.memory_space<vmem>>, %arg10: memref<128x128xbf16, #tpu.memory_space<vmem>>, %arg11: memref<1x128xf32, #tpu.memory_space<vmem>>, %arg12: memref<8x128xbf16, #tpu.memory_space<vmem>>) attributes {dimension_semantics = [#tpu.dimension_semantics<parallel>], iteration_bounds = array<i64: 1>, scalar_prefetch = 0 : i64, scratch_operands = 0 : i64, tpu.core_type = #tpu.core_type<tc>, window_params = [{transform_indices = @transform_0, window_bounds = array<i64: 8, 128>}, {pipeline_mode = #tpu.pipeline_mode<synchronous>, transform_indices = @transform_1, window_bounds = array<i64: 128, 256>}, {pipeline_mode = #tpu.pipeline_mode<synchronous>, transform_indices = @transform_2, window_bounds = array<i64: 1, 256>}, {pipeline_mode = #tpu.pipeline_mode<synchronous>, transform_indices = @transform_3, window_bounds = array<i64: 256, 128>}, {pipeline_mode = #tpu.pipeline_mode<synchronous>, transform_indices = @transform_4, window_bounds = array<i64: 1, 128>}, {pipeline_mode = #tpu.pipeline_mode<synchronous>, transform_indices = @transform_5, window_bounds = array<i64: 128, 128>}, {pipeline_mode = #tpu.pipeline_mode<synchronous>, transform_indices = @transform_6, window_bounds = array<i64: 1, 128>}, {pipeline_mode = #tpu.pipeline_mode<synchronous>, transform_indices = @transform_7, window_bounds = array<i64: 128, 128>}, {pipeline_mode = #tpu.pipeline_mode<synchronous>, transform_indices = @transform_8, window_bounds = array<i64: 1, 128>}, {pipeline_mode = #tpu.pipeline_mode<synchronous>, transform_indices = @transform_9, window_bounds = array<i64: 128, 128>}, {pipeline_mode = #tpu.pipeline_mode<synchronous>, transform_indices = @transform_10, window_bounds = array<i64: 1, 128>}, {transform_indices = @transform_11, window_bounds = array<i64: 8, 128>}]} {
    %c0 = arith.constant 0 : index
    %c0_0 = arith.constant 0 : index
    %0 = vector.load %arg1[%c0, %c0_0] : memref<8x128xf32, #tpu.memory_space<vmem>>, vector<8x128xf32>
    %1 = arith.truncf %0 : vector<8x128xf32> to vector<8x128xbf16>
    %c0_1 = arith.constant 0 : index
    %c0_2 = arith.constant 0 : index
    %2 = vector.load %arg2[%c0_1, %c0_2] : memref<128x256xbf16, #tpu.memory_space<vmem>>, vector<128x256xbf16>
    %cst = arith.constant dense<0.000000e+00> : vector<8x256xf32>
    %3 = tpu.matmul %1, %2, %cst {dimension_numbers = #tpu.dot_dimension_numbers<[1], [0], [0], [1], [0, 0, 1, 1], [], []>} : vector<8x128xbf16>, vector<128x256xbf16>, vector<8x256xf32> -> vector<8x256xf32>
    %c0_3 = arith.constant 0 : index
    %c0_4 = arith.constant 0 : index
    %4 = vector.load %arg3[%c0_3, %c0_4] : memref<1x256xf32, #tpu.memory_space<vmem>>, vector<1x256xf32>
    %5 = vector.broadcast %4 : vector<1x256xf32> to vector<8x256xf32>
    %6 = arith.addf %3, %5 : vector<8x256xf32>
    %cst_5 = arith.constant 0.000000e+00 : f32
    %7 = vector.broadcast %cst_5 : f32 to vector<8x256xf32>
    %8 = arith.maximumf %6, %7 : vector<8x256xf32>
    %9 = arith.truncf %8 : vector<8x256xf32> to vector<8x256xbf16>
    %c0_6 = arith.constant 0 : index
    %c0_7 = arith.constant 0 : index
    %10 = vector.load %arg4[%c0_6, %c0_7] : memref<256x128xbf16, #tpu.memory_space<vmem>>, vector<256x128xbf16>
    %cst_8 = arith.constant dense<0.000000e+00> : vector<8x128xf32>
    %11 = tpu.matmul %9, %10, %cst_8 {dimension_numbers = #tpu.dot_dimension_numbers<[1], [0], [0], [1], [0, 0, 1, 1], [], []>} : vector<8x256xbf16>, vector<256x128xbf16>, vector<8x128xf32> -> vector<8x128xf32>
    %c0_9 = arith.constant 0 : index
    %c0_10 = arith.constant 0 : index
    %12 = vector.load %arg5[%c0_9, %c0_10] : memref<1x128xf32, #tpu.memory_space<vmem>>, vector<1x128xf32>
    %13 = vector.broadcast %12 : vector<1x128xf32> to vector<8x128xf32>
    %14 = arith.addf %11, %13 : vector<8x128xf32>
    %cst_11 = arith.constant 0.000000e+00 : f32
    %15 = vector.broadcast %cst_11 : f32 to vector<8x128xf32>
    %16 = arith.maximumf %14, %15 : vector<8x128xf32>
    %17 = arith.truncf %16 : vector<8x128xf32> to vector<8x128xbf16>
    %c0_12 = arith.constant 0 : index
    %c0_13 = arith.constant 0 : index
    %18 = vector.load %arg6[%c0_12, %c0_13] : memref<128x128xbf16, #tpu.memory_space<vmem>>, vector<128x128xbf16>
    %cst_14 = arith.constant dense<0.000000e+00> : vector<8x128xf32>
    %19 = tpu.matmul %17, %18, %cst_14 {dimension_numbers = #tpu.dot_dimension_numbers<[1], [0], [0], [1], [0, 0, 1, 1], [], []>} : vector<8x128xbf16>, vector<128x128xbf16>, vector<8x128xf32> -> vector<8x128xf32>
    %c0_15 = arith.constant 0 : index
    %c0_16 = arith.constant 0 : index
    %20 = vector.load %arg7[%c0_15, %c0_16] : memref<1x128xf32, #tpu.memory_space<vmem>>, vector<1x128xf32>
    %21 = vector.broadcast %20 : vector<1x128xf32> to vector<8x128xf32>
    %22 = arith.addf %19, %21 : vector<8x128xf32>
    %cst_17 = arith.constant 0.000000e+00 : f32
    %23 = vector.broadcast %cst_17 : f32 to vector<8x128xf32>
    %24 = arith.maximumf %22, %23 : vector<8x128xf32>
    %25 = arith.truncf %24 : vector<8x128xf32> to vector<8x128xbf16>
    %c0_18 = arith.constant 0 : index
    %c0_19 = arith.constant 0 : index
    %26 = vector.load %arg8[%c0_18, %c0_19] : memref<128x128xbf16, #tpu.memory_space<vmem>>, vector<128x128xbf16>
    %cst_20 = arith.constant dense<0.000000e+00> : vector<8x128xf32>
    %27 = tpu.matmul %25, %26, %cst_20 {dimension_numbers = #tpu.dot_dimension_numbers<[1], [0], [0], [1], [0, 0, 1, 1], [], []>} : vector<8x128xbf16>, vector<128x128xbf16>, vector<8x128xf32> -> vector<8x128xf32>
    %c0_21 = arith.constant 0 : index
    %c0_22 = arith.constant 0 : index
    %28 = vector.load %arg9[%c0_21, %c0_22] : memref<1x128xf32, #tpu.memory_space<vmem>>, vector<1x128xf32>
    %29 = vector.broadcast %28 : vector<1x128xf32> to vector<8x128xf32>
    %30 = arith.addf %27, %29 : vector<8x128xf32>
    %cst_23 = arith.constant 0.000000e+00 : f32
    %31 = vector.broadcast %cst_23 : f32 to vector<8x128xf32>
    %32 = arith.maximumf %30, %31 : vector<8x128xf32>
    %33 = arith.truncf %32 : vector<8x128xf32> to vector<8x128xbf16>
    %c0_24 = arith.constant 0 : index
    %c0_25 = arith.constant 0 : index
    %34 = vector.load %arg10[%c0_24, %c0_25] : memref<128x128xbf16, #tpu.memory_space<vmem>>, vector<128x128xbf16>
    %cst_26 = arith.constant dense<0.000000e+00> : vector<8x128xf32>
    %35 = tpu.matmul %33, %34, %cst_26 {dimension_numbers = #tpu.dot_dimension_numbers<[1], [0], [0], [1], [0, 0, 1, 1], [], []>} : vector<8x128xbf16>, vector<128x128xbf16>, vector<8x128xf32> -> vector<8x128xf32>
    %c0_27 = arith.constant 0 : index
    %c0_28 = arith.constant 0 : index
    %36 = vector.load %arg11[%c0_27, %c0_28] : memref<1x128xf32, #tpu.memory_space<vmem>>, vector<1x128xf32>
    %37 = vector.broadcast %36 : vector<1x128xf32> to vector<8x128xf32>
    %38 = arith.addf %35, %37 : vector<8x128xf32>
    %cst_29 = arith.constant 0.000000e+00 : f32
    %39 = vector.broadcast %cst_29 : f32 to vector<8x128xf32>
    %40 = arith.maximumf %39, %38 : vector<8x128xf32>
    %41 = vector.broadcast %cst_29 : f32 to vector<8x128xf32>
    %42 = arith.subf %41, %38 : vector<8x128xf32>
    %43 = arith.cmpf one, %42, %42 : vector<8x128xf32>
    %44 = vector.broadcast %cst_29 : f32 to vector<8x128xf32>
    %45 = arith.addf %44, %38 : vector<8x128xf32>
    %46 = math.absf %42 : vector<8x128xf32>
    %cst_30 = arith.constant 0.000000e+00 : f32
    %47 = vector.broadcast %cst_30 : f32 to vector<8x128xf32>
    %48 = arith.subf %47, %46 : vector<8x128xf32>
    %49 = math.exp %48 : vector<8x128xf32>
    %50 = math.log1p %49 : vector<8x128xf32>
    %51 = arith.addf %40, %50 : vector<8x128xf32>
    %52 = arith.select %43, %45, %51 : vector<8x128xi1>, vector<8x128xf32>
    %cst_31 = arith.constant 9.99999971E-10 : f32
    %53 = vector.broadcast %cst_31 : f32 to vector<8x128xf32>
    %54 = arith.cmpf ogt, %52, %53 : vector<8x128xf32>
    %cst_32 = arith.constant 9.99999971E-10 : f32
    %55 = vector.broadcast %cst_32 : f32 to vector<8x128xf32>
    %56 = arith.select %54, %52, %55 : vector<8x128xi1>, vector<8x128xf32>
    %57 = arith.truncf %56 : vector<8x128xf32> to vector<8x128xbf16>
    %c0_33 = arith.constant 0 : index
    %c0_34 = arith.constant 0 : index
    %58 = vector.load %arg12[%c0_33, %c0_34] : memref<8x128xbf16, #tpu.memory_space<vmem>>, vector<8x128xbf16>
    tpu.vector_store %arg12[%c0_33, %c0_34], %57 {strides = array<i32>} : memref<8x128xbf16, #tpu.memory_space<vmem>>, vector<8x128xbf16>,
    return
  }
  func.func @transform_0(%arg0: i32) -> (i32, i32) {
    %c0_i32 = arith.constant 0 : i32
    %c0_i32_0 = arith.constant 0 : i32
    return %arg0, %c0_i32 : i32, i32
  }
  func.func @transform_1(%arg0: i32) -> (i32, i32) {
    %c0_i32 = arith.constant 0 : i32
    %c0_i32_0 = arith.constant 0 : i32
    %c0_i32_1 = arith.constant 0 : i32
    return %c0_i32, %c0_i32_0 : i32, i32
  }
  func.func @transform_2(%arg0: i32) -> (i32, i32) {
    %c0_i32 = arith.constant 0 : i32
    %c0_i32_0 = arith.constant 0 : i32
    %c0_i32_1 = arith.constant 0 : i32
    return %c0_i32, %c0_i32_0 : i32, i32
  }
  func.func @transform_3(%arg0: i32) -> (i32, i32) {
    %c0_i32 = arith.constant 0 : i32
    %c0_i32_0 = arith.constant 0 : i32
    %c0_i32_1 = arith.constant 0 : i32
    return %c0_i32, %c0_i32_0 : i32, i32
  }
  func.func @transform_4(%arg0: i32) -> (i32, i32) {
    %c0_i32 = arith.constant 0 : i32
    %c0_i32_0 = arith.constant 0 : i32
    %c0_i32_1 = arith.constant 0 : i32
    return %c0_i32, %c0_i32_0 : i32, i32
  }
  func.func @transform_5(%arg0: i32) -> (i32, i32) {
    %c0_i32 = arith.constant 0 : i32
    %c0_i32_0 = arith.constant 0 : i32
    %c0_i32_1 = arith.constant 0 : i32
    return %c0_i32, %c0_i32_0 : i32, i32
  }
  func.func @transform_6(%arg0: i32) -> (i32, i32) {
    %c0_i32 = arith.constant 0 : i32
    %c0_i32_0 = arith.constant 0 : i32
    %c0_i32_1 = arith.constant 0 : i32
    return %c0_i32, %c0_i32_0 : i32, i32
  }
  func.func @transform_7(%arg0: i32) -> (i32, i32) {
    %c0_i32 = arith.constant 0 : i32
    %c0_i32_0 = arith.constant 0 : i32
    %c0_i32_1 = arith.constant 0 : i32
    return %c0_i32, %c0_i32_0 : i32, i32
  }
  func.func @transform_8(%arg0: i32) -> (i32, i32) {
    %c0_i32 = arith.constant 0 : i32
    %c0_i32_0 = arith.constant 0 : i32
    %c0_i32_1 = arith.constant 0 : i32
    return %c0_i32, %c0_i32_0 : i32, i32
  }
  func.func @transform_9(%arg0: i32) -> (i32, i32) {
    %c0_i32 = arith.constant 0 : i32
    %c0_i32_0 = arith.constant 0 : i32
    %c0_i32_1 = arith.constant 0 : i32
    return %c0_i32, %c0_i32_0 : i32, i32
  }
  func.func @transform_10(%arg0: i32) -> (i32, i32) {
    %c0_i32 = arith.constant 0 : i32
    %c0_i32_0 = arith.constant 0 : i32
    %c0_i32_1 = arith.constant 0 : i32
    return %c0_i32, %c0_i32_0 : i32, i32
  }
  func.func @transform_11(%arg0: i32) -> (i32, i32) {
    %c0_i32 = arith.constant 0 : i32
    %c0_i32_0 = arith.constant 0 : i32
    return %arg0, %c0_i32 : i32, i32
  }
}

</mosaic_0001>

<llo_original>
// kernel: tpu_custom_call.1
$region0: #{tpu_custom_call.1}
  #allocation0 [shape = 'u32[]', space=smem, size = 0x4, offset = 0x4, fixed_abs, tag = 'smem constant byte address 0x4 - core index']
  #allocation1 [shape = 'u32[144,128]{1,0:T(1,128)}', space=vmem, size = 0x12000, scoped, tag = 'internal scratch']
  %s0 = inlined_call_operand.hbm [shape: f32[8,128], index: 0, kind: input, shape index: {}]
  %s1 = inlined_call_operand.hbm [shape: bf16[128,256], index: 1, kind: input, shape index: {}]
  %s2 = inlined_call_operand.vmem [shape: f32[1,256], index: 2, kind: input, shape index: {}]
  %s3 = inlined_call_operand.hbm [shape: bf16[256,128], index: 3, kind: input, shape index: {}]
  %s4 = inlined_call_operand.vmem [shape: f32[1,128], index: 4, kind: input, shape index: {}]
  %s5 = inlined_call_operand.hbm [shape: bf16[128,128], index: 5, kind: input, shape index: {}]
  %s6 = inlined_call_operand.vmem [shape: f32[1,128], index: 6, kind: input, shape index: {}]
  %s7 = inlined_call_operand.hbm [shape: bf16[128,128], index: 7, kind: input, shape index: {}]
  %s8 = inlined_call_operand.vmem [shape: f32[1,128], index: 8, kind: input, shape index: {}]
  %s9 = inlined_call_operand.hbm [shape: bf16[128,128], index: 9, kind: input, shape index: {}]
  %s10 = inlined_call_operand.vmem [shape: f32[1,128], index: 10, kind: input, shape index: {}]
  %s11 = inlined_call_operand.hbm [shape: bf16[8,128], index: 11, kind: output, shape index: {}]
  %s12 = sld [smem:[#allocation0]]
  $region78: #{tpu_custom_call.1} parent=0
    _
  %s14 = ssub.s32 1, %s12
  %s15 = scalar_select 0, %s14, %s12
  $region1: #{tpu_custom_call.1} parent=0
    #allocation2 [shape = 'u8[4096]{0}', space=vmem, size = 0x1000, scoped, tag = 'input window, operand 0, single buffered']
    #allocation3 [shape = 's32[1]{0}', space=sflag, size = 0x4, scoped, tag = 'scoped memory for tpu_custom_call.1']
    #allocation4 [shape = 's32[1]{0}', space=sflag, size = 0x4, scoped, tag = 'scoped memory for tpu_custom_call.1']
    #allocation5 [shape = 'u8[65536]{0}', space=vmem, size = 0x10000, scoped, tag = 'input window, operand 1, single buffered']
    #allocation6 [shape = 's32[1]{0}', space=sflag, size = 0x4, scoped, tag = 'scoped memory for tpu_custom_call.1']
    #allocation7 [shape = 'u8[65536]{0}', space=vmem, size = 0x10000, scoped, tag = 'input window, operand 3, single buffered']
    #allocation8 [shape = 'u8[32768]{0}', space=vmem, size = 0x8000, scoped, tag = 'input window, operand 5, single buffered']
    #allocation9 [shape = 's32[1]{0}', space=sflag, size = 0x4, scoped, tag = 'scoped memory for tpu_custom_call.1']
    #allocation10 [shape = 'u8[32768]{0}', space=vmem, size = 0x8000, scoped, tag = 'input window, operand 7, single buffered']
    #allocation11 [shape = 'u8[32768]{0}', space=vmem, size = 0x8000, scoped, tag = 'input window, operand 9, single buffered']
    #allocation12 [shape = 's32[1]{0}', space=sflag, size = 0x4, scoped, tag = 'scoped memory for tpu_custom_call.1']
    #allocation13 [shape = 'u8[2048]{0}', space=vmem, size = 0x800, scoped, tag = 'output window, operand 0, single buffered']
    %16 = vsyncpa [#allocation3], 0
    %17 = vsyncpa [#allocation6], 0
    %18 = vsyncpa [#allocation9], 0
    %19 = vsyncpa [#allocation12], 0
    %20 = vsyncpa [#allocation4], 0
    // Predicated region
    $region2: #{tpu_custom_call.1} parent=1 // pred_check
      _
    $region3: #{tpu_custom_call.1} parent=1 // pred_check_branch
      %22 = sbr.rel (0) target = $region5
    $region4: #{tpu_custom_call.1} parent=1 // pred_region
      %s24 = ssub.s32 128, 128
      %25 = vsyncadd [#allocation3], %s24
      %s27 = sshll.u32 [#allocation2], 4
      %s28 = int_to_ptr.vmem [resolvable:$true] %s27
      %30 = dma.hbm_to_vmem [thread:$0]  %s0, 128, %s28, [#allocation3]
    $region5: #{tpu_custom_call.1} parent=1 // pred_fallthru
      _
    // Predicated region
    $region6: #{tpu_custom_call.1} parent=1 // pred_check
      _
    $region7: #{tpu_custom_call.1} parent=1 // pred_check_branch
      %32 = sbr.rel (0) target = $region9
    $region8: #{tpu_custom_call.1} parent=1 // pred_region
      %s34 = ssub.s32 2048, 2048
      %35 = vsyncadd [#allocation6], %s34
      %s36 = sshll.u32 [#allocation5], 4
      %s37 = int_to_ptr.vmem [resolvable:$true] %s36
      %42 = dma.hbm_to_vmem [thread:$0]  %s1, 2048, %s37, [#allocation6], 128, 128, 8
    $region9: #{tpu_custom_call.1} parent=1 // pred_fallthru
      _
    // Predicated region
    $region10: #{tpu_custom_call.1} parent=1 // pred_check
      _
    $region11: #{tpu_custom_call.1} parent=1 // pred_check_branch
      %44 = sbr.rel (0) target = $region13
    $region12: #{tpu_custom_call.1} parent=1 // pred_region
      _
    $region13: #{tpu_custom_call.1} parent=1 // pred_fallthru
      _
    // Predicated region
    $region14: #{tpu_custom_call.1} parent=1 // pred_check
      _
    $region15: #{tpu_custom_call.1} parent=1 // pred_check_branch
      %46 = sbr.rel (0) target = $region17
    $region16: #{tpu_custom_call.1} parent=1 // pred_region
      %s48 = ssub.s32 2048, 2048
      %49 = vsyncadd [#allocation6], %s48
      %s50 = sshll.u32 [#allocation7], 4
      %s51 = int_to_ptr.vmem [resolvable:$true] %s50
      %56 = dma.hbm_to_vmem [thread:$0]  %s3, 2048, %s51, [#allocation6], 64, 64, 4
    $region17: #{tpu_custom_call.1} parent=1 // pred_fallthru
      _
    // Predicated region
    $region18: #{tpu_custom_call.1} parent=1 // pred_check
      _
    $region19: #{tpu_custom_call.1} parent=1 // pred_check_branch
      %58 = sbr.rel (0) target = $region21
    $region20: #{tpu_custom_call.1} parent=1 // pred_region
      _
    $region21: #{tpu_custom_call.1} parent=1 // pred_fallthru
      _
    // Predicated region
    $region22: #{tpu_custom_call.1} parent=1 // pred_check
      _
    $region23: #{tpu_custom_call.1} parent=1 // pred_check_branch
      %60 = sbr.rel (0) target = $region25
    $region24: #{tpu_custom_call.1} parent=1 // pred_region
      %s62 = ssub.s32 1024, 1024
      %63 = vsyncadd [#allocation9], %s62
      %s64 = sshll.u32 [#allocation8], 4
      %s65 = int_to_ptr.vmem [resolvable:$true] %s64
      %70 = dma.hbm_to_vmem [thread:$0]  %s5, 1024, %s65, [#allocation9], 64, 64, 4
    $region25: #{tpu_custom_call.1} parent=1 // pred_fallthru
      _
    // Predicated region
    $region26: #{tpu_custom_call.1} parent=1 // pred_check
      _
    $region27: #{tpu_custom_call.1} parent=1 // pred_check_branch
      %72 = sbr.rel (0) target = $region29
    $region28: #{tpu_custom_call.1} parent=1 // pred_region
      _
    $region29: #{tpu_custom_call.1} parent=1 // pred_fallthru
      _
    // Predicated region
    $region30: #{tpu_custom_call.1} parent=1 // pred_check
      _
    $region31: #{tpu_custom_call.1} parent=1 // pred_check_branch
      %74 = sbr.rel (0) target = $region33
    $region32: #{tpu_custom_call.1} parent=1 // pred_region
      %s76 = ssub.s32 1024, 1024
      %77 = vsyncadd [#allocation9], %s76
      %s78 = sshll.u32 [#allocation10], 4
      %s79 = int_to_ptr.vmem [resolvable:$true] %s78
      %84 = dma.hbm_to_vmem [thread:$0]  %s7, 1024, %s79, [#allocation9], 64, 64, 4
    $region33: #{tpu_custom_call.1} parent=1 // pred_fallthru
      _
    // Predicated region
    $region34: #{tpu_custom_call.1} parent=1 // pred_check
      _
    $region35: #{tpu_custom_call.1} parent=1 // pred_check_branch
      %86 = sbr.rel (0) target = $region37
    $region36: #{tpu_custom_call.1} parent=1 // pred_region
      _
    $region37: #{tpu_custom_call.1} parent=1 // pred_fallthru
      _
    // Predicated region
    $region38: #{tpu_custom_call.1} parent=1 // pred_check
      _
    $region39: #{tpu_custom_call.1} parent=1 // pred_check_branch
      %88 = sbr.rel (0) target = $region41
    $region40: #{tpu_custom_call.1} parent=1 // pred_region
      %s90 = ssub.s32 1024, 1024
      %91 = vsyncadd [#allocation12], %s90
      %s92 = sshll.u32 [#allocation11], 4
      %s93 = int_to_ptr.vmem [resolvable:$true] %s92
      %98 = dma.hbm_to_vmem [thread:$0]  %s9, 1024, %s93, [#allocation12], 64, 64, 4
    $region41: #{tpu_custom_call.1} parent=1 // pred_fallthru
      _
    // Predicated region
    $region42: #{tpu_custom_call.1} parent=1 // pred_check
      _
    $region43: #{tpu_custom_call.1} parent=1 // pred_check_branch
      %100 = sbr.rel (0) target = $region45
    $region44: #{tpu_custom_call.1} parent=1 // pred_region
      _
    $region45: #{tpu_custom_call.1} parent=1 // pred_fallthru
      _
    // Predicated region
    $region46: #{tpu_custom_call.1} parent=1 // pred_check
      _
    $region47: #{tpu_custom_call.1} parent=1 // pred_check_branch
      %102 = sbr.rel (0) target = $region49
    $region48: #{tpu_custom_call.1} parent=1 // pred_region
      %103 = dma.done [#allocation3], 128
    $region49: #{tpu_custom_call.1} parent=1 // pred_fallthru
      _
    // Predicated region
    $region50: #{tpu_custom_call.1} parent=1 // pred_check
      _
    $region51: #{tpu_custom_call.1} parent=1 // pred_check_branch
      %105 = sbr.rel (0) target = $region53
    $region52: #{tpu_custom_call.1} parent=1 // pred_region
      %106 = dma.done [#allocation6], 2048
    $region53: #{tpu_custom_call.1} parent=1 // pred_fallthru
      _
    // Predicated region
    $region54: #{tpu_custom_call.1} parent=1 // pred_check
      _
    $region55: #{tpu_custom_call.1} parent=1 // pred_check_branch
      %108 = sbr.rel (0) target = $region57
    $region56: #{tpu_custom_call.1} parent=1 // pred_region
      %109 = dma.done [#allocation6], 2048
    $region57: #{tpu_custom_call.1} parent=1 // pred_fallthru
      _
    // Predicated region
    $region58: #{tpu_custom_call.1} parent=1 // pred_check
      _
    $region59: #{tpu_custom_call.1} parent=1 // pred_check_branch
      %111 = sbr.rel (0) target = $region61
    $region60: #{tpu_custom_call.1} parent=1 // pred_region
      %112 = dma.done [#allocation9], 1024
    $region61: #{tpu_custom_call.1} parent=1 // pred_fallthru
      _
    // Predicated region
    $region62: #{tpu_custom_call.1} parent=1 // pred_check
      _
    $region63: #{tpu_custom_call.1} parent=1 // pred_check_branch
      %114 = sbr.rel (0) target = $region65
    $region64: #{tpu_custom_call.1} parent=1 // pred_region
      %115 = dma.done [#allocation9], 1024
    $region65: #{tpu_custom_call.1} parent=1 // pred_fallthru
      _
    // Predicated region
    $region66: #{tpu_custom_call.1} parent=1 // pred_check
      _
    $region67: #{tpu_custom_call.1} parent=1 // pred_check_branch
      %117 = sbr.rel (0) target = $region69
    $region68: #{tpu_custom_call.1} parent=1 // pred_region
      %118 = dma.done [#allocation12], 1024
    $region69: #{tpu_custom_call.1} parent=1 // pred_fallthru
      _
    %v120 = vld [vmem:[#allocation2] sm:$0xff]
    %v121 = vpack.c.bf16 %v120, %v120
    %v122 = vld [vmem:[#allocation5] sm:$0xff]
    %v123 = vld [vmem:[#allocation5 + $0x8] sm:$0xff]
    %v124 = vld [vmem:[#allocation5 + $0x10] sm:$0xff]
    %v125 = vld [vmem:[#allocation5 + $0x18] sm:$0xff]
    %v126 = vld [vmem:[#allocation5 + $0x20] sm:$0xff]
    %v127 = vld [vmem:[#allocation5 + $0x28] sm:$0xff]
    %v128 = vld [vmem:[#allocation5 + $0x30] sm:$0xff]
    %v129 = vld [vmem:[#allocation5 + $0x38] sm:$0xff]
    %v130 = vld [vmem:[#allocation5 + $0x40] sm:$0xff]
    %v131 = vld [vmem:[#allocation5 + $0x48] sm:$0xff]
    %v132 = vld [vmem:[#allocation5 + $0x50] sm:$0xff]
    %v133 = vld [vmem:[#allocation5 + $0x58] sm:$0xff]
    %v134 = vld [vmem:[#allocation5 + $0x60] sm:$0xff]
    %v135 = vld [vmem:[#allocation5 + $0x68] sm:$0xff]
    %v136 = vld [vmem:[#allocation5 + $0x70] sm:$0xff]
    %v137 = vld [vmem:[#allocation5 + $0x78] sm:$0xff]
    %v138 = vld [vmem:[%s2] sm:$0x3]
    %v140 = vlaneseq
    %v141 = vshrl.u32 %v140, 7
    %v142 = vsub.s32 0, %v141
    %v143 = vrot.slane %v138, %v142
    %v144 = vlaneseq
    %v145 = vshrl.u32 %v144, 7
    %v146 = vsub.s32 1, %v145
    %v147 = vrot.slane %v138, %v146
    %v166 = vunpack.c.l.b16 %v122
    %v167 = vunpack.c.h.b16 %v122
    %v168 = vunpack.c.l.b16 %v123
    %v169 = vunpack.c.h.b16 %v123
    %v170 = vunpack.c.l.b16 %v124
    %v171 = vunpack.c.h.b16 %v124
    %v172 = vunpack.c.l.b16 %v125
    %v173 = vunpack.c.h.b16 %v125
    %v174 = vunpack.c.l.b16 %v126
    %v175 = vunpack.c.h.b16 %v126
    %v176 = vunpack.c.l.b16 %v127
    %v177 = vunpack.c.h.b16 %v127
    %v178 = vunpack.c.l.b16 %v128
    %v179 = vunpack.c.h.b16 %v128
    %v180 = vunpack.c.l.b16 %v129
    %v181 = vunpack.c.h.b16 %v129
    %v182 = vunpack.c.l.b16 %v130
    %v183 = vunpack.c.h.b16 %v130
    %v184 = vunpack.c.l.b16 %v131
    %v185 = vunpack.c.h.b16 %v131
    %v186 = vunpack.c.l.b16 %v132
    %v187 = vunpack.c.h.b16 %v132
    %v188 = vunpack.c.l.b16 %v133
    %v189 = vunpack.c.h.b16 %v133
    %v190 = vunpack.c.l.b16 %v134
    %v191 = vunpack.c.h.b16 %v134
    %v192 = vunpack.c.l.b16 %v135
    %v193 = vunpack.c.h.b16 %v135
    %v194 = vunpack.c.l.b16 %v136
    %v195 = vunpack.c.h.b16 %v136
    %v196 = vunpack.c.l.b16 %v137
    %v197 = vunpack.c.h.b16 %v137
    %v198 = vpack.c.b16 %v168, %v166
    %v199 = vpack.c.b16 %v169, %v167
    %v200 = vpack.c.b16 %v172, %v170
    %v201 = vpack.c.b16 %v173, %v171
    %v202 = vpack.c.b16 %v176, %v174
    %v203 = vpack.c.b16 %v177, %v175
    %v204 = vpack.c.b16 %v180, %v178
    %v205 = vpack.c.b16 %v181, %v179
    %v206 = vpack.c.b16 %v184, %v182
    %v207 = vpack.c.b16 %v185, %v183
    %v208 = vpack.c.b16 %v188, %v186
    %v209 = vpack.c.b16 %v189, %v187
    %v210 = vpack.c.b16 %v192, %v190
    %v211 = vpack.c.b16 %v193, %v191
    %v212 = vpack.c.b16 %v196, %v194
    %v213 = vpack.c.b16 %v197, %v195
    %230 = vmatprep.subr.bf16.mxu0 %v199
    %231 = vmatpush1.bf16.msra.mxu0 %v198
    %232 = vmatprep.subr.bf16.mxu0 %v201
    %233 = vmatpush1.bf16.msra.mxu0 %v200
    %234 = vmatprep.subr.bf16.mxu0 %v203
    %235 = vmatpush1.bf16.msra.mxu0 %v202
    %236 = vmatprep.subr.bf16.mxu0 %v205
    %237 = vmatpush1.bf16.msra.mxu0 %v204
    %238 = vmatprep.subr.bf16.mxu0 %v207
    %239 = vmatpush1.bf16.msra.mxu0 %v206
    %240 = vmatprep.subr.bf16.mxu0 %v209
    %241 = vmatpush1.bf16.msra.mxu0 %v208
    %242 = vmatprep.subr.bf16.mxu0 %v211
    %243 = vmatpush1.bf16.msra.mxu0 %v210
    %244 = vmatprep.subr.bf16.mxu0 %v213
    %245 = vmatpush1.bf16.msra.mxu0 %v212
    %246 = vmatprep.subr.bf16.mxu0 0
    %247 = vmatpush1.bf16.msra.mxu0 0
    %248 = vmatprep.subr.bf16.mxu0 0
    %249 = vmatpush1.bf16.msra.mxu0 0
    %250 = vmatprep.subr.bf16.mxu0 0
    %251 = vmatpush1.bf16.msra.mxu0 0
    %252 = vmatprep.subr.bf16.mxu0 0
    %253 = vmatpush1.bf16.msra.mxu0 0
    %254 = vmatprep.subr.bf16.mxu0 0
    %255 = vmatpush1.bf16.msra.mxu0 0
    %256 = vmatprep.subr.bf16.mxu0 0
    %257 = vmatpush1.bf16.msra.mxu0 0
    %258 = vmatprep.subr.bf16.mxu0 0
    %259 = vmatpush1.bf16.msra.mxu0 0
    %260 = vmatprep.subr.bf16.mxu0 0
    %261 = vmatpush1.bf16.msra.mxu0 0
    %262 = vmatprep.mubr.bf16.mxu0 0
    %263 = vmatmul.mubr.bf16.gmra.mrb[0].mxu0 %v121
    %v264 = vpop.f32.mrb[0].mxu0
    %v265 = vadd.f32 %v143, %v264
    %v266 = vpop.f32.mrb[0].mxu0
    %v267 = vadd.f32 %v147, %v266
    %v268 = vpop.f32.mrb[0].mxu0
    %v269 = vpop.f32.mrb[0].mxu0
    %270 = vdwg.mxu0
    %v271 = vmax.f32 %v265, 0.0
    %v272 = vmax.f32 %v267, 0.0
    %v273 = vpack.c.bf16 %v271, %v271
    %v274 = vpack.c.bf16 %v272, %v272
    %v275 = vld [vmem:[#allocation7] sm:$0xf]
    %v276 = vld [vmem:[#allocation7 + $0x4] sm:$0xf]
    %v277 = vld [vmem:[#allocation7 + $0x8] sm:$0xf]
    %v278 = vld [vmem:[#allocation7 + $0xc] sm:$0xf]
    %v279 = vld [vmem:[#allocation7 + $0x10] sm:$0xf]
    %v280 = vld [vmem:[#allocation7 + $0x14] sm:$0xf]
    %v281 = vld [vmem:[#allocation7 + $0x18] sm:$0xf]
    %v282 = vld [vmem:[#allocation7 + $0x1c] sm:$0xf]
    %v283 = vld [vmem:[#allocation7 + $0x20] sm:$0xf]
    %v284 = vld [vmem:[#allocation7 + $0x24] sm:$0xf]
    %v285 = vld [vmem:[#allocation7 + $0x28] sm:$0xf]
    %v286 = vld [vmem:[#allocation7 + $0x2c] sm:$0xf]
    %v287 = vld [vmem:[#allocation7 + $0x30] sm:$0xf]
    %v288 = vld [vmem:[#allocation7 + $0x34] sm:$0xf]
    %v289 = vld [vmem:[#allocation7 + $0x38] sm:$0xf]
    %v290 = vld [vmem:[#allocation7 + $0x3c] sm:$0xf]
    %v291 = vld [vmem:[#allocation7 + $0x40] sm:$0xf]
    %v292 = vld [vmem:[#allocation7 + $0x44] sm:$0xf]
    %v293 = vld [vmem:[#allocation7 + $0x48] sm:$0xf]
    %v294 = vld [vmem:[#allocation7 + $0x4c] sm:$0xf]
    %v295 = vld [vmem:[#allocation7 + $0x50] sm:$0xf]
    %v296 = vld [vmem:[#allocation7 + $0x54] sm:$0xf]
    %v297 = vld [vmem:[#allocation7 + $0x58] sm:$0xf]
    %v298 = vld [vmem:[#allocation7 + $0x5c] sm:$0xf]
    %v299 = vld [vmem:[#allocation7 + $0x60] sm:$0xf]
    %v300 = vld [vmem:[#allocation7 + $0x64] sm:$0xf]
    %v301 = vld [vmem:[#allocation7 + $0x68] sm:$0xf]
    %v302 = vld [vmem:[#allocation7 + $0x6c] sm:$0xf]
    %v303 = vld [vmem:[#allocation7 + $0x70] sm:$0xf]
    %v304 = vld [vmem:[#allocation7 + $0x74] sm:$0xf]
    %v305 = vld [vmem:[#allocation7 + $0x78] sm:$0xf]
    %v306 = vld [vmem:[#allocation7 + $0x7c] sm:$0xf]
    %v307 = vld [vmem:[%s4] sm:$0x1]
    %v309 = vlaneseq
    %v310 = vshrl.u32 %v309, 7
    %v311 = vsub.s32 0, %v310
    %v312 = vrot.slane %v307, %v311
    %v346 = vunpack.c.l.b16 %v275
    %v347 = vunpack.c.l.b16 %v276
    %v348 = vunpack.c.l.b16 %v277
    %v349 = vunpack.c.l.b16 %v278
    %v350 = vunpack.c.l.b16 %v279
    %v351 = vunpack.c.l.b16 %v280
    %v352 = vunpack.c.l.b16 %v281
    %v353 = vunpack.c.l.b16 %v282
    %v354 = vunpack.c.l.b16 %v283
    %v355 = vunpack.c.l.b16 %v284
    %v356 = vunpack.c.l.b16 %v285
    %v357 = vunpack.c.l.b16 %v286
    %v358 = vunpack.c.l.b16 %v287
    %v359 = vunpack.c.l.b16 %v288
    %v360 = vunpack.c.l.b16 %v289
    %v361 = vunpack.c.l.b16 %v290
    %v362 = vunpack.c.l.b16 %v291
    %v363 = vunpack.c.l.b16 %v292
    %v364 = vunpack.c.l.b16 %v293
    %v365 = vunpack.c.l.b16 %v294
    %v366 = vunpack.c.l.b16 %v295
    %v367 = vunpack.c.l.b16 %v296
    %v368 = vunpack.c.l.b16 %v297
    %v369 = vunpack.c.l.b16 %v298
    %v370 = vunpack.c.l.b16 %v299
    %v371 = vunpack.c.l.b16 %v300
    %v372 = vunpack.c.l.b16 %v301
    %v373 = vunpack.c.l.b16 %v302
    %v374 = vunpack.c.l.b16 %v303
    %v375 = vunpack.c.l.b16 %v304
    %v376 = vunpack.c.l.b16 %v305
    %v377 = vunpack.c.l.b16 %v306
    %v378 = vpack.c.b16 %v347, %v346
    %v379 = vpack.c.b16 %v349, %v348
    %v380 = vpack.c.b16 %v351, %v350
    %v381 = vpack.c.b16 %v353, %v352
    %v382 = vpack.c.b16 %v355, %v354
    %v383 = vpack.c.b16 %v357, %v356
    %v384 = vpack.c.b16 %v359, %v358
    %v385 = vpack.c.b16 %v361, %v360
    %v386 = vpack.c.b16 %v363, %v362
    %v387 = vpack.c.b16 %v365, %v364
    %v388 = vpack.c.b16 %v367, %v366
    %v389 = vpack.c.b16 %v369, %v368
    %v390 = vpack.c.b16 %v371, %v370
    %v391 = vpack.c.b16 %v373, %v372
    %v392 = vpack.c.b16 %v375, %v374
    %v393 = vpack.c.b16 %v377, %v376
    %410 = vmatprep.subr.bf16.mxu0 0
    %411 = vmatpush1.bf16.msra.mxu0 %v378
    %412 = vmatprep.subr.bf16.mxu0 0
    %413 = vmatpush1.bf16.msra.mxu0 %v379
    %414 = vmatprep.subr.bf16.mxu0 0
    %415 = vmatpush1.bf16.msra.mxu0 %v380
    %416 = vmatprep.subr.bf16.mxu0 0
    %417 = vmatpush1.bf16.msra.mxu0 %v381
    %418 = vmatprep.subr.bf16.mxu0 0
    %419 = vmatpush1.bf16.msra.mxu0 %v382
    %420 = vmatprep.subr.bf16.mxu0 0
    %421 = vmatpush1.bf16.msra.mxu0 %v383
    %422 = vmatprep.subr.bf16.mxu0 0
    %423 = vmatpush1.bf16.msra.mxu0 %v384
    %424 = vmatprep.subr.bf16.mxu0 0
    %425 = vmatpush1.bf16.msra.mxu0 %v385
    %426 = vmatprep.subr.bf16.mxu0 0
    %427 = vmatpush1.bf16.msra.mxu0 %v386
    %428 = vmatprep.subr.bf16.mxu0 0
    %429 = vmatpush1.bf16.msra.mxu0 %v387
    %430 = vmatprep.subr.bf16.mxu0 0
    %431 = vmatpush1.bf16.msra.mxu0 %v388
    %432 = vmatprep.subr.bf16.mxu0 0
    %433 = vmatpush1.bf16.msra.mxu0 %v389
    %434 = vmatprep.subr.bf16.mxu0 0
    %435 = vmatpush1.bf16.msra.mxu0 %v390
    %436 = vmatprep.subr.bf16.mxu0 0
    %437 = vmatpush1.bf16.msra.mxu0 %v391
    %438 = vmatprep.subr.bf16.mxu0 0
    %439 = vmatpush1.bf16.msra.mxu0 %v392
    %440 = vmatprep.subr.bf16.mxu0 0
    %441 = vmatpush1.bf16.msra.mxu0 %v393
    %442 = vmatprep.mubr.bf16.mxu0 %v274
    %443 = vmatmul.mubr.bf16.gmra.mrb[0].mxu0 %v273
    %v444 = vpop.f32.mrb[0].mxu0
    %v445 = vadd.f32 %v312, %v444
    %v446 = vpop.f32.mrb[0].mxu0
    %v447 = vpop.f32.mrb[0].mxu0
    %v448 = vpop.f32.mrb[0].mxu0
    %449 = vdwg.mxu0
    %v450 = vmax.f32 %v445, 0.0
    %v451 = vpack.c.bf16 %v450, %v450
    %v452 = vld [vmem:[#allocation8] sm:$0xf]
    %v453 = vld [vmem:[#allocation8 + $0x4] sm:$0xf]
    %v454 = vld [vmem:[#allocation8 + $0x8] sm:$0xf]
    %v455 = vld [vmem:[#allocation8 + $0xc] sm:$0xf]
    %v456 = vld [vmem:[#allocation8 + $0x10] sm:$0xf]
    %v457 = vld [vmem:[#allocation8 + $0x14] sm:$0xf]
    %v458 = vld [vmem:[#allocation8 + $0x18] sm:$0xf]
    %v459 = vld [vmem:[#allocation8 + $0x1c] sm:$0xf]
    %v460 = vld [vmem:[#allocation8 + $0x20] sm:$0xf]
    %v461 = vld [vmem:[#allocation8 + $0x24] sm:$0xf]
    %v462 = vld [vmem:[#allocation8 + $0x28] sm:$0xf]
    %v463 = vld [vmem:[#allocation8 + $0x2c] sm:$0xf]
    %v464 = vld [vmem:[#allocation8 + $0x30] sm:$0xf]
    %v465 = vld [vmem:[#allocation8 + $0x34] sm:$0xf]
    %v466 = vld [vmem:[#allocation8 + $0x38] sm:$0xf]
    %v467 = vld [vmem:[#allocation8 + $0x3c] sm:$0xf]
    %v468 = vld [vmem:[%s6] sm:$0x1]
    %v470 = vlaneseq
    %v471 = vshrl.u32 %v470, 7
    %v472 = vsub.s32 0, %v471
    %v473 = vrot.slane %v468, %v472
    %v491 = vunpack.c.l.b16 %v452
    %v492 = vunpack.c.l.b16 %v453
    %v493 = vunpack.c.l.b16 %v454
    %v494 = vunpack.c.l.b16 %v455
    %v495 = vunpack.c.l.b16 %v456
    %v496 = vunpack.c.l.b16 %v457
    %v497 = vunpack.c.l.b16 %v458
    %v498 = vunpack.c.l.b16 %v459
    %v499 = vunpack.c.l.b16 %v460
    %v500 = vunpack.c.l.b16 %v461
    %v501 = vunpack.c.l.b16 %v462
    %v502 = vunpack.c.l.b16 %v463
    %v503 = vunpack.c.l.b16 %v464
    %v504 = vunpack.c.l.b16 %v465
    %v505 = vunpack.c.l.b16 %v466
    %v506 = vunpack.c.l.b16 %v467
    %v507 = vpack.c.b16 %v492, %v491
    %v508 = vpack.c.b16 %v494, %v493
    %v509 = vpack.c.b16 %v496, %v495
    %v510 = vpack.c.b16 %v498, %v497
    %v511 = vpack.c.b16 %v500, %v499
    %v512 = vpack.c.b16 %v502, %v501
    %v513 = vpack.c.b16 %v504, %v503
    %v514 = vpack.c.b16 %v506, %v505
    %523 = vmatprep.subr.bf16.mxu0 0
    %524 = vmatpush1.bf16.msra.mxu0 %v507
    %525 = vmatprep.subr.bf16.mxu0 0
    %526 = vmatpush1.bf16.msra.mxu0 %v508
    %527 = vmatprep.subr.bf16.mxu0 0
    %528 = vmatpush1.bf16.msra.mxu0 %v509
    %529 = vmatprep.subr.bf16.mxu0 0
    %530 = vmatpush1.bf16.msra.mxu0 %v510
    %531 = vmatprep.subr.bf16.mxu0 0
    %532 = vmatpush1.bf16.msra.mxu0 %v511
    %533 = vmatprep.subr.bf16.mxu0 0
    %534 = vmatpush1.bf16.msra.mxu0 %v512
    %535 = vmatprep.subr.bf16.mxu0 0
    %536 = vmatpush1.bf16.msra.mxu0 %v513
    %537 = vmatprep.subr.bf16.mxu0 0
    %538 = vmatpush1.bf16.msra.mxu0 %v514
    %539 = vmatprep.subr.bf16.mxu0 0
    %540 = vmatpush1.bf16.msra.mxu0 0
    %541 = vmatprep.subr.bf16.mxu0 0
    %542 = vmatpush1.bf16.msra.mxu0 0
    %543 = vmatprep.subr.bf16.mxu0 0
    %544 = vmatpush1.bf16.msra.mxu0 0
    %545 = vmatprep.subr.bf16.mxu0 0
    %546 = vmatpush1.bf16.msra.mxu0 0
    %547 = vmatprep.subr.bf16.mxu0 0
    %548 = vmatpush1.bf16.msra.mxu0 0
    %549 = vmatprep.subr.bf16.mxu0 0
    %550 = vmatpush1.bf16.msra.mxu0 0
    %551 = vmatprep.subr.bf16.mxu0 0
    %552 = vmatpush1.bf16.msra.mxu0 0
    %553 = vmatprep.subr.bf16.mxu0 0
    %554 = vmatpush1.bf16.msra.mxu0 0
    %555 = vmatprep.mubr.bf16.mxu0 0
    %556 = vmatmul.mubr.bf16.gmra.mrb[0].mxu0 %v451
    %v557 = vpop.f32.mrb[0].mxu0
    %v558 = vadd.f32 %v473, %v557
    %v559 = vpop.f32.mrb[0].mxu0
    %v560 = vpop.f32.mrb[0].mxu0
    %v561 = vpop.f32.mrb[0].mxu0
    %562 = vdwg.mxu0
    %v563 = vmax.f32 %v558, 0.0
    %v564 = vpack.c.bf16 %v563, %v563
    %v565 = vld [vmem:[#allocation10] sm:$0xf]
    %v566 = vld [vmem:[#allocation10 + $0x4] sm:$0xf]
    %v567 = vld [vmem:[#allocation10 + $0x8] sm:$0xf]
    %v568 = vld [vmem:[#allocation10 + $0xc] sm:$0xf]
    %v569 = vld [vmem:[#allocation10 + $0x10] sm:$0xf]
    %v570 = vld [vmem:[#allocation10 + $0x14] sm:$0xf]
    %v571 = vld [vmem:[#allocation10 + $0x18] sm:$0xf]
    %v572 = vld [vmem:[#allocation10 + $0x1c] sm:$0xf]
    %v573 = vld [vmem:[#allocation10 + $0x20] sm:$0xf]
    %v574 = vld [vmem:[#allocation10 + $0x24] sm:$0xf]
    %v575 = vld [vmem:[#allocation10 + $0x28] sm:$0xf]
    %v576 = vld [vmem:[#allocation10 + $0x2c] sm:$0xf]
    %v577 = vld [vmem:[#allocation10 + $0x30] sm:$0xf]
    %v578 = vld [vmem:[#allocation10 + $0x34] sm:$0xf]
    %v579 = vld [vmem:[#allocation10 + $0x38] sm:$0xf]
    %v580 = vld [vmem:[#allocation10 + $0x3c] sm:$0xf]
    %v581 = vld [vmem:[%s8] sm:$0x1]
    %v583 = vlaneseq
    %v584 = vshrl.u32 %v583, 7
    %v585 = vsub.s32 0, %v584
    %v586 = vrot.slane %v581, %v585
    %v604 = vunpack.c.l.b16 %v565
    %v605 = vunpack.c.l.b16 %v566
    %v606 = vunpack.c.l.b16 %v567
    %v607 = vunpack.c.l.b16 %v568
    %v608 = vunpack.c.l.b16 %v569
    %v609 = vunpack.c.l.b16 %v570
    %v610 = vunpack.c.l.b16 %v571
    %v611 = vunpack.c.l.b16 %v572
    %v612 = vunpack.c.l.b16 %v573
    %v613 = vunpack.c.l.b16 %v574
    %v614 = vunpack.c.l.b16 %v575
    %v615 = vunpack.c.l.b16 %v576
    %v616 = vunpack.c.l.b16 %v577
    %v617 = vunpack.c.l.b16 %v578
    %v618 = vunpack.c.l.b16 %v579
    %v619 = vunpack.c.l.b16 %v580
    %v620 = vpack.c.b16 %v605, %v604
    %v621 = vpack.c.b16 %v607, %v606
    %v622 = vpack.c.b16 %v609, %v608
    %v623 = vpack.c.b16 %v611, %v610
    %v624 = vpack.c.b16 %v613, %v612
    %v625 = vpack.c.b16 %v615, %v614
    %v626 = vpack.c.b16 %v617, %v616
    %v627 = vpack.c.b16 %v619, %v618
    %636 = vmatprep.subr.bf16.mxu0 0
    %637 = vmatpush1.bf16.msra.mxu0 %v620
    %638 = vmatprep.subr.bf16.mxu0 0
    %639 = vmatpush1.bf16.msra.mxu0 %v621
    %640 = vmatprep.subr.bf16.mxu0 0
    %641 = vmatpush1.bf16.msra.mxu0 %v622
    %642 = vmatprep.subr.bf16.mxu0 0
    %643 = vmatpush1.bf16.msra.mxu0 %v623
    %644 = vmatprep.subr.bf16.mxu0 0
    %645 = vmatpush1.bf16.msra.mxu0 %v624
    %646 = vmatprep.subr.bf16.mxu0 0
    %647 = vmatpush1.bf16.msra.mxu0 %v625
    %648 = vmatprep.subr.bf16.mxu0 0
    %649 = vmatpush1.bf16.msra.mxu0 %v626
    %650 = vmatprep.subr.bf16.mxu0 0
    %651 = vmatpush1.bf16.msra.mxu0 %v627
    %652 = vmatprep.subr.bf16.mxu0 0
    %653 = vmatpush1.bf16.msra.mxu0 0
    %654 = vmatprep.subr.bf16.mxu0 0
    %655 = vmatpush1.bf16.msra.mxu0 0
    %656 = vmatprep.subr.bf16.mxu0 0
    %657 = vmatpush1.bf16.msra.mxu0 0
    %658 = vmatprep.subr.bf16.mxu0 0
    %659 = vmatpush1.bf16.msra.mxu0 0
    %660 = vmatprep.subr.bf16.mxu0 0
    %661 = vmatpush1.bf16.msra.mxu0 0
    %662 = vmatprep.subr.bf16.mxu0 0
    %663 = vmatpush1.bf16.msra.mxu0 0
    %664 = vmatprep.subr.bf16.mxu0 0
    %665 = vmatpush1.bf16.msra.mxu0 0
    %666 = vmatprep.subr.bf16.mxu0 0
    %667 = vmatpush1.bf16.msra.mxu0 0
    %668 = vmatprep.mubr.bf16.mxu0 0
    %669 = vmatmul.mubr.bf16.gmra.mrb[0].mxu0 %v564
    %v670 = vpop.f32.mrb[0].mxu0
    %v671 = vadd.f32 %v586, %v670
    %v672 = vpop.f32.mrb[0].mxu0
    %v673 = vpop.f32.mrb[0].mxu0
    %v674 = vpop.f32.mrb[0].mxu0
    %675 = vdwg.mxu0
    %v676 = vmax.f32 %v671, 0.0
    %v677 = vpack.c.bf16 %v676, %v676
    %v678 = vld [vmem:[#allocation11] sm:$0xf]
    %v679 = vld [vmem:[#allocation11 + $0x4] sm:$0xf]
    %v680 = vld [vmem:[#allocation11 + $0x8] sm:$0xf]
    %v681 = vld [vmem:[#allocation11 + $0xc] sm:$0xf]
    %v682 = vld [vmem:[#allocation11 + $0x10] sm:$0xf]
    %v683 = vld [vmem:[#allocation11 + $0x14] sm:$0xf]
    %v684 = vld [vmem:[#allocation11 + $0x18] sm:$0xf]
    %v685 = vld [vmem:[#allocation11 + $0x1c] sm:$0xf]
    %v686 = vld [vmem:[#allocation11 + $0x20] sm:$0xf]
    %v687 = vld [vmem:[#allocation11 + $0x24] sm:$0xf]
    %v688 = vld [vmem:[#allocation11 + $0x28] sm:$0xf]
    %v689 = vld [vmem:[#allocation11 + $0x2c] sm:$0xf]
    %v690 = vld [vmem:[#allocation11 + $0x30] sm:$0xf]
    %v691 = vld [vmem:[#allocation11 + $0x34] sm:$0xf]
    %v692 = vld [vmem:[#allocation11 + $0x38] sm:$0xf]
    %v693 = vld [vmem:[#allocation11 + $0x3c] sm:$0xf]
    %v694 = vld [vmem:[%s10] sm:$0x1]
    %v696 = vlaneseq
    %v697 = vshrl.u32 %v696, 7
    %v698 = vsub.s32 0, %v697
    %v699 = vrot.slane %v694, %v698
    %v717 = vunpack.c.l.b16 %v678
    %v718 = vunpack.c.l.b16 %v679
    %v719 = vunpack.c.l.b16 %v680
    %v720 = vunpack.c.l.b16 %v681
    %v721 = vunpack.c.l.b16 %v682
    %v722 = vunpack.c.l.b16 %v683
    %v723 = vunpack.c.l.b16 %v684
    %v724 = vunpack.c.l.b16 %v685
    %v725 = vunpack.c.l.b16 %v686
    %v726 = vunpack.c.l.b16 %v687
    %v727 = vunpack.c.l.b16 %v688
    %v728 = vunpack.c.l.b16 %v689
    %v729 = vunpack.c.l.b16 %v690
    %v730 = vunpack.c.l.b16 %v691
    %v731 = vunpack.c.l.b16 %v692
    %v732 = vunpack.c.l.b16 %v693
    %v733 = vpack.c.b16 %v718, %v717
    %v734 = vpack.c.b16 %v720, %v719
    %v735 = vpack.c.b16 %v722, %v721
    %v736 = vpack.c.b16 %v724, %v723
    %v737 = vpack.c.b16 %v726, %v725
    %v738 = vpack.c.b16 %v728, %v727
    %v739 = vpack.c.b16 %v730, %v729
    %v740 = vpack.c.b16 %v732, %v731
    %749 = vmatprep.subr.bf16.mxu0 0
    %750 = vmatpush1.bf16.msra.mxu0 %v733
    %751 = vmatprep.subr.bf16.mxu0 0
    %752 = vmatpush1.bf16.msra.mxu0 %v734
    %753 = vmatprep.subr.bf16.mxu0 0
    %754 = vmatpush1.bf16.msra.mxu0 %v735
    %755 = vmatprep.subr.bf16.mxu0 0
    %756 = vmatpush1.bf16.msra.mxu0 %v736
    %757 = vmatprep.subr.bf16.mxu0 0
    %758 = vmatpush1.bf16.msra.mxu0 %v737
    %759 = vmatprep.subr.bf16.mxu0 0
    %760 = vmatpush1.bf16.msra.mxu0 %v738
    %761 = vmatprep.subr.bf16.mxu0 0
    %762 = vmatpush1.bf16.msra.mxu0 %v739
    %763 = vmatprep.subr.bf16.mxu0 0
    %764 = vmatpush1.bf16.msra.mxu0 %v740
    %765 = vmatprep.subr.bf16.mxu0 0
    %766 = vmatpush1.bf16.msra.mxu0 0
    %767 = vmatprep.subr.bf16.mxu0 0
    %768 = vmatpush1.bf16.msra.mxu0 0
    %769 = vmatprep.subr.bf16.mxu0 0
    %770 = vmatpush1.bf16.msra.mxu0 0
    %771 = vmatprep.subr.bf16.mxu0 0
    %772 = vmatpush1.bf16.msra.mxu0 0
    %773 = vmatprep.subr.bf16.mxu0 0
    %774 = vmatpush1.bf16.msra.mxu0 0
    %775 = vmatprep.subr.bf16.mxu0 0
    %776 = vmatpush1.bf16.msra.mxu0 0
    %777 = vmatprep.subr.bf16.mxu0 0
    %778 = vmatpush1.bf16.msra.mxu0 0
    %779 = vmatprep.subr.bf16.mxu0 0
    %780 = vmatpush1.bf16.msra.mxu0 0
    %781 = vmatprep.mubr.bf16.mxu0 0
    %782 = vmatmul.mubr.bf16.gmra.mrb[0].mxu0 %v677
    %v783 = vpop.f32.mrb[0].mxu0
    %v784 = vadd.f32 %v699, %v783
    %v785 = vpop.f32.mrb[0].mxu0
    %v786 = vpop.f32.mrb[0].mxu0
    %v787 = vpop.f32.mrb[0].mxu0
    %788 = vdwg.mxu0
    %v789 = vmax.f32 %v784, 0.0
    %v790 = vsub.f32 0.0, %v784
    %vm791 = vcmp.ne.f32.partialorder %v790, %v790
    %v792 = vadd.f32 %v784, 0.0
    %v793 = vand.u32 2147483647, %v790
    %v794 = vsub.f32 0.0, %v793
    %v795 = vmul.f32 %v794, 1.442695
    %v796 = vpow.pop %v795
    %v797 = vadd.f32 %v796, 1.0
    %v798 = vlog2.pop %v797
    %v799 = vmul.f32 %v798, 0.6931472
    %v800 = vmul.f32 -0.5, %v796
    %v801 = vadd.f32 %v800, 1.0
    %v802 = vmul.f32 %v801, %v796
    %v803 = vand.u32 2147483647, %v796
    %vm804 = vcmp.lt.f32.partialorder %v803, 0.0004427343
    %v805 = vsel %vm804, %v802, %v799
    %v806 = vadd.f32 %v789, %v805
    %v807 = vsel %vm791, %v792, %v806
    %vm808 = vcmp.gt.f32.partialorder %v807, 1e-09
    %v809 = vsel %vm808, %v807, 1e-09
    %v810 = vpack.c.bf16 %v809, %v809
    %811 = vst [vmem:[#allocation13] sm:$0xf] %v810
    // Predicated region
    $region70: #{tpu_custom_call.1} parent=1 // pred_check
      _
    $region71: #{tpu_custom_call.1} parent=1 // pred_check_branch
      %813 = sbr.rel (0) target = $region73
    $region72: #{tpu_custom_call.1} parent=1 // pred_region
      %s815 = ssub.s32 64, 64
      %816 = vsyncadd [#allocation4], %s815
      %s818 = sshll.u32 [#allocation13], 4
      %s819 = int_to_ptr.vmem [resolvable:$true] %s818
      %821 = dma.vmem_to_hbm [thread:$0]  %s819, 64, %s11, [#allocation4]
    $region73: #{tpu_custom_call.1} parent=1 // pred_fallthru
      _
    // Predicated region
    $region74: #{tpu_custom_call.1} parent=1 // pred_check
      _
    $region75: #{tpu_custom_call.1} parent=1 // pred_check_branch
      %823 = sbr.rel (0) target = $region77
    $region76: #{tpu_custom_call.1} parent=1 // pred_region
      %824 = dma.done [#allocation4], 64
    $region77: #{tpu_custom_call.1} parent=1 // pred_fallthru
      _
    %825 = vsyncpa [#allocation3], 1
    %826 = vsyncpa [#allocation6], 1
    %827 = vsyncpa [#allocation9], 1
    %828 = vsyncpa [#allocation12], 1
    %829 = vsyncpa [#allocation4], 1

</llo_original>
